<compile_context>
chip_gen: v5e
topology: v5e:2x2
jax: 0.10.0
libtpu: 0.0.40
codegen_flags: <defaults>
</compile_context>

<pallas_src>
import functools

import jax
import jax.numpy as jnp
from jax import lax
from jax.experimental import pallas as pl
from jax.experimental.pallas import tpu as pltpu


def _vmem():
    return pl.BlockSpec(memory_space=pltpu.MemorySpace.VMEM)


def _smem():
    return pl.BlockSpec(memory_space=pltpu.MemorySpace.SMEM)


# ----------------------------- packed 3x3 conv helpers -----------------------------
def _banded_taps(w_hwio, W):
    """(3, 3, Cin, Cout) -> (3, W*Cin, W*Cout) block-banded tap matrices.

    B[di][jp*Cin + c, j*Cout + f] = w_hwio[di, jp-j+1, c, f] if |jp-j| <= 1 else 0,
    so a row-shifted packed image (R, W*Cin) @ B[di] applies the column shifts,
    zero column padding and channel mixing of kernel row di in one MXU matmul.
    """
    _, _, Cin, Cout = w_hwio.shape
    jp = jnp.arange(W)[:, None]          # input column
    j = jnp.arange(W)[None, :]           # output column
    dj = jp - j + 1                      # (W, W)
    valid = (dj >= 0) & (dj <= 2)
    wg = w_hwio[:, jnp.clip(dj, 0, 2)]   # (3, W, W, Cin, Cout)
    wg = jnp.where(valid[None, :, :, None, None], wg, 0.0)
    return jnp.transpose(wg, (0, 1, 3, 2, 4)).reshape(3, W * Cin, W * Cout)


def _tap_matrices(conv_weight, W):
    # conv:   w_hwio[di, dj, c, f]  = conv_weight[f, c, di, dj]
    # conv_t: adjoint -> spatially flipped kernel with channel dims swapped
    w_hwio = jnp.transpose(conv_weight, (2, 3, 1, 0)).astype(jnp.float32)
    wt_hwio = jnp.transpose(w_hwio[::-1, ::-1], (0, 1, 3, 2))
    return _banded_taps(w_hwio, W), _banded_taps(wt_hwio, W)


def _row_masks(tile_r, H):
    """Boolean masks killing rows whose up/down neighbour is outside the image.

    Tiles are aligned to image boundaries (tile_r % H == 0), so the mask depends
    only on the local row index; computed in-kernel (no DMA'd mask streams)."""
    r = lax.broadcasted_iota(jnp.int32, (tile_r, 1), 0) % H
    return r != 0, r != (H - 1)


def _packed_conv3(x2, taps, mask_up, mask_dn):
    """3x3 'same' cross-correlation in packed layout, f32 accumulation.

    x2:   (R, W*Cin) with rows r = n*H + i (any MXU-friendly dtype)
    taps: 3 banded matrices (W*Cin, W*Cout)
    Row shifts via pltpu.roll (XLU); boundary rows zeroed with jnp.where so
    garbage in padded partial tiles can never propagate (0*NaN hazard).
    """
    # TODO(synk): follow-up — concatenate the 3 shifted tiles along lanes and use
    # a single (3K, Nout) tap matmul to better fill the 256-deep MXU on v6e/v7x.
    R = x2.shape[0]
    zero = jnp.zeros((), x2.dtype)
    acc = jnp.dot(x2, taps[1], preferred_element_type=jnp.float32)
    up = jnp.where(mask_up, pltpu.roll(x2, shift=1, axis=0), zero)      # row r reads r-1
    acc = acc + jnp.dot(up, taps[0], preferred_element_type=jnp.float32)
    dn = jnp.where(mask_dn, pltpu.roll(x2, shift=R - 1, axis=0), zero)  # row r reads r+1
    acc = acc + jnp.dot(dn, taps[2], preferred_element_type=jnp.float32)
    return acc


# ----------------------------- kernels -----------------------------
def dfb_forward_kernel(l_ref, u_ref, x_ref, B_ref, Bt_ref, out_ref, *, H):
    """Fused DFBBlock forward on one row tile: conv_t -> subtract -> conv -> prox.

    gamma is already folded into the conv taps B (wrapper); epilogue in f32."""
    act_dt = u_ref.dtype
    tile_r = u_ref.shape[0]
    mask_up, mask_dn = _row_masks(tile_r, H)
    lthr = l_ref[0, 0]
    u2 = u_ref[...]                          # (tile_r, W*F)   bf16/f32
    x2 = x_ref[...]                          # (tile_r, W*C)
    B = (B_ref[0], B_ref[1], B_ref[2])       # gamma*conv taps: (W*C, W*F)
    Bt = (Bt_ref[0], Bt_ref[1], Bt_ref[2])   # conv_t taps:     (W*F, W*C)

    # tmp = x_ref - conv_t(u_in)                     (f32 accumulation)
    tmp32 = x2.astype(jnp.float32) - _packed_conv3(u2, Bt, mask_up, mask_dn)
    # g1 = u_in + gamma*conv(tmp)                    (gamma folded into B)
    # TODO(synk): tmp is only W*C lanes wide (64 in the demo config); packing two
    # image rows per packed row for the C-channel tensor would fill 128 lanes.
    g1 = u2.astype(jnp.float32) + _packed_conv3(tmp32.astype(act_dt), B,
                                                mask_up, mask_dn)
    # p1 = g1 - gamma*SoftShk(g1/gamma, l/gamma) == g1 - relu(g1-l) + relu(-g1-l)
    out_ref[...] = g1 - jnp.maximum(g1 - lthr, 0.0) + jnp.maximum(-g1 - lthr, 0.0)


def power_iter_kernel(x0_ref, B_ref, Bt_ref, val_ref, *, H, tol, max_iter):
    """||conv_t o conv|| power iteration, fully fused into one kernel launch (f32)."""
    mask_up, mask_dn = _row_masks(x0_ref.shape[0], H)
    B = (B_ref[0], B_ref[1], B_ref[2])
    Bt = (Bt_ref[0], Bt_ref[1], Bt_ref[2])

    def body(_, state):
        x, val, rel = state
        live = rel >= tol                    # (1,1): freezes once converged (== torch break)
        y = _packed_conv3(_packed_conv3(x, B, mask_up, mask_dn), Bt, mask_up, mask_dn)
        s = jnp.sum(jnp.sum(y * y, axis=1, keepdims=True), axis=0, keepdims=True)
        inv = lax.rsqrt(s + 1e-30)           # EUP rsqrt; eps guards all-zero weights
        nv = s * inv                         # == ||y||
        nrel = jnp.abs(nv - val) / val
        x = jnp.where(live, y * inv, x)
        val = jnp.where(live, nv, val)
        rel = jnp.where(live, nrel, rel)
        return (x, val, rel)

    # TODO(synk): gate post-convergence iterations (lax.while_loop) instead of
    # freezing the state; off the hot path (compute_lip2 is cached per weight).
    init = (x0_ref[...], jnp.ones((1, 1), jnp.float32),
            jnp.full((1, 1), jnp.inf, jnp.float32))
    _, val, _ = lax.fori_loop(0, max_iter, body, init)
    val_ref[...] = val


# ----------------------------- wrappers -----------------------------
def compute_lip2(conv_weight, C, H, W, key, tol=1e-4, max_iter=300):
    """op_norm2((1, C, H, W)): operator norm of conv_t o conv.

    Depends only on conv_weight and the image shape -> compute once per weight
    and pass the result into dfb_block_forward (hot-path hoist)."""
    B, Bt = _tap_matrices(conv_weight, W)      # f32 taps for the power iteration
    # TODO(synk): torch.randn RNG stream is not reproducible in JAX; a
    # deterministic jax.random init converges to the same operator norm.
    x0 = jax.random.normal(key, (H, W * C), jnp.float32)
    x0 = x0 / jnp.linalg.norm(x0.reshape(-1))

    val = pl.pallas_call(
        functools.partial(power_iter_kernel, H=H, tol=tol, max_iter=max_iter),
        out_shape=jax.ShapeDtypeStruct((1, 1), jnp.float32),
        in_specs=[_vmem()] * 3,
        out_specs=_vmem(),
    )(x0, B, Bt)
    return val[0, 0]


def _auto_tile_rows(R, H, WC, WF, act_bytes, budget_bytes=20 << 20):
    """Rows per tile from a VMEM working budget (generation-safe: fits the 32 MiB
    scoped limit on v6e/v7x with headroom for the resident taps)."""
    taps_bytes = 2 * 3 * WC * WF * act_bytes                     # resident B + Bt
    per_row = 2 * ((WF + WC) * act_bytes + WF * 4) \
        + (3 * WF + 3 * WC) * 4                                  # dbl-buffered I/O + f32 live
    rows = max(H, (budget_bytes - taps_bytes) // max(per_row, 1))
    rows = (rows // H) * H                                       # align to image boundaries
    return int(max(H, min(rows, R)))


def dfb_block_forward_packed(u2, x2, l, conv_weight, lip2, *, N, C, F, H, W,
                             tile_rows=None, act_dtype=jnp.bfloat16):
    """Hot-path entry point: activations stay in the lane-dense packed layout
    (N*H, W*Chan).  Keep this layout across repeated DFB blocks in an unrolled
    PnP network; NCHW<->packed conversion belongs at the network boundary.
    Returns (p2 packed f32 (N*H, W*F), gamma)."""
    R = N * H
    WF, WC = W * F, W * C
    gamma = 1.8 / lip2

    Bf, Btf = _tap_matrices(conv_weight, W)
    B = (Bf * gamma).astype(act_dtype)       # fold gamma into the conv taps (one-time scale)
    Bt = Btf.astype(act_dtype)
    u2 = u2.astype(act_dtype)                # bf16 MXU operands, f32 accumulation in-kernel
    x2 = x2.astype(act_dtype)
    l_arr = jnp.reshape(jnp.asarray(l, jnp.float32), (1, 1))

    if tile_rows is None:
        tile_rows = _auto_tile_rows(R, H, WC, WF, jnp.dtype(act_dtype).itemsize)
    tile_rows = min(int(tile_rows), R)
    assert tile_rows % H == 0, "row tiles must align to image boundaries (multiple of H)"
    if tile_rows % 8 != 0 and tile_rows != R:
        tile_rows = R                        # (8,128) sublane rule fallback: single block
    grid = (pl.cdiv(R, tile_rows),)

    p2 = pl.pallas_call(
        functools.partial(dfb_forward_kernel, H=H),
        out_shape=jax.ShapeDtypeStruct((R, WF), jnp.float32),
        grid=grid,
        in_specs=[
            _smem(),                                                 # l (scalar)
            pl.BlockSpec((tile_rows, WF), lambda i: (i, 0)),         # u2  (streamed)
            pl.BlockSpec((tile_rows, WC), lambda i: (i, 0)),         # x2  (streamed)
            pl.BlockSpec((3, WC, WF), lambda i: (0, 0, 0)),          # gamma*conv taps (resident)
            pl.BlockSpec((3, WF, WC), lambda i: (0, 0, 0)),          # conv_t taps     (resident)
        ],
        out_specs=pl.BlockSpec((tile_rows, WF), lambda i: (i, 0)),   # lane-dense output slab
        compiler_params=pltpu.CompilerParams(
            dimension_semantics=("parallel",),       # shard row tiles across v7x's 2 TCs
            vmem_limit_bytes=32 * 1024 * 1024),
    )(l_arr, u2, x2, B, Bt)
    return p2, gamma


def dfb_block_forward(u_in_nchw, x_ref_nchw, l, conv_weight, lip2=None, key=None,
                      tile_rows=None, act_dtype=jnp.bfloat16):
    """NCHW network-boundary wrapper.  conv_weight: PyTorch Conv2d layout
    (F, C, 3, 3); conv_t weight tied.  If lip2 is None the power iteration runs
    here (full module semantics); pass a cached compute_lip2 value to keep it
    off the hot path."""
    N, F, H, W = u_in_nchw.shape
    C = x_ref_nchw.shape[1]
    if lip2 is None:
        if key is None:
            key = jax.random.PRNGKey(0)
        lip2 = compute_lip2(conv_weight, C, H, W, key)

    # NCHW -> lane-dense packed (N*H, W*Chan).  In an unrolled net keep the packed
    # layout across blocks and call dfb_block_forward_packed directly instead.
    u2 = jnp.transpose(u_in_nchw, (0, 2, 3, 1)).reshape(N * H, W * F)
    x2 = jnp.transpose(x_ref_nchw, (0, 2, 3, 1)).reshape(N * H, W * C)

    p2, gamma = dfb_block_forward_packed(
        u2, x2, l, conv_weight, lip2, N=N, C=C, F=F, H=H, W=W,
        tile_rows=tile_rows, act_dtype=act_dtype)
    p1 = jnp.transpose(p2.reshape(N, H, W, F), (0, 3, 1, 2))
    return p1, gamma


# ----------------------------- pure-JAX reference -----------------------------
def _conv_ref(x_nhwc, w_hwio):
    return lax.conv_general_dilated(
        x_nhwc, w_hwio, window_strides=(1, 1), padding="SAME",
        dimension_numbers=("NHWC", "HWIO", "NHWC"))


def reference_forward(u_nhwc, x_nhwc, l, w_hwio, gamma):
    conv = lambda t: _conv_ref(t, w_hwio)
    _, vjp = jax.vjp(conv, jnp.zeros_like(x_nhwc))   # adjoint == tied ConvTranspose2d
    convt = lambda u: vjp(u)[0]
    tmp = x_nhwc - convt(u_nhwc)
    g1 = u_nhwc + gamma * conv(tmp)
    nl = (jnp.maximum(g1 / gamma - l / gamma, 0.0)
          - jnp.maximum(-g1 / gamma - l / gamma, 0.0))
    return g1 - gamma * nl


if __name__ == "__main__":
    key = jax.random.PRNGKey(0)
    k_w, k_u, k_x, k_pi = jax.random.split(key, 4)

    N, C, F, H, W = 2, 4, 8, 16, 16          # batch, channels, features, spatial
    conv_weight = 0.1 * jax.random.normal(k_w, (F, C, 3, 3), jnp.float32)
    u_in = jax.random.normal(k_u, (N, F, H, W), jnp.float32)
    x_ref = jax.random.normal(k_x, (N, C, H, W), jnp.float32)
    l = 0.05

    # (1) power iteration: one fused kernel, hoisted/cached off the hot path
    lip2 = jax.block_until_ready(compute_lip2(conv_weight, C, H, W, k_pi))

    # (2) hot path: tiled + pipelined forward (tile_rows=H -> 2 grid steps here)
    fwd_bf16 = jax.jit(functools.partial(dfb_block_forward, tile_rows=H,
                                         act_dtype=jnp.bfloat16))
    p1_bf16, gamma = fwd_bf16(u_in, x_ref, l, conv_weight, lip2)
    p1_bf16 = jax.block_until_ready(p1_bf16)

    # f32-operand variant of the same tiled kernel (structural exactness check)
    fwd_f32 = jax.jit(functools.partial(dfb_block_forward, tile_rows=H,
                                        act_dtype=jnp.float32))
    p1_f32, _ = fwd_f32(u_in, x_ref, l, conv_weight, lip2)
    p1_f32 = jax.block_until_ready(p1_f32)

    # (3) full original module semantics (op_norm2 inside forward) also runs
    p1_full, _ = dfb_block_forward(u_in, x_ref, l, conv_weight, key=k_pi)
    p1_full = jax.block_until_ready(p1_full)

    # correctness vs a pure-JAX reference using the same gamma
    w_hwio = jnp.transpose(conv_weight, (2, 3, 1, 0))
    u_nhwc = jnp.transpose(u_in, (0, 2, 3, 1))
    x_nhwc = jnp.transpose(x_ref, (0, 2, 3, 1))
    ref = jnp.transpose(reference_forward(u_nhwc, x_nhwc, l, w_hwio, gamma),
                        (0, 3, 1, 2))
    scale = float(jnp.max(jnp.abs(ref)))

    err_f32 = float(jnp.max(jnp.abs(p1_f32 - ref)))
    assert err_f32 <= 1e-3 * (1.0 + scale), f"f32 mismatch: max abs err {err_f32}"

    err_bf16 = float(jnp.max(jnp.abs(p1_bf16 - ref)))     # bf16-operand rounding budget
    assert err_bf16 <= 2e-2 * (1.0 + scale), f"bf16 mismatch: max abs err {err_bf16}"

    err_full = float(jnp.max(jnp.abs(p1_bf16 - p1_full)))
    assert err_full <= 1e-3 * (1.0 + scale), f"cached/full lip2 mismatch: {err_full}"

    print("KERNEL_OK")
</pallas_src>

<mosaic_0001>
module attributes {stable_mosaic.version = 11 : i64} {
  func.func @power_iter_kernel(%arg0: memref<16x64xf32, #tpu.memory_space<vmem>>, %arg1: memref<3x64x128xf32, #tpu.memory_space<vmem>>, %arg2: memref<3x128x64xf32, #tpu.memory_space<vmem>>, %arg3: memref<1x1xf32, #tpu.memory_space<vmem>>) attributes {dimension_semantics = [], scalar_prefetch = 0 : i64, scratch_operands = 0 : i64, tpu.core_type = #tpu.core_type<tc>} {
    %0 = tpu.iota {dimensions = array<i32: 0>} : vector<16x1xi32>
    %c16_i32 = arith.constant 16 : i32
    %c0_i32 = arith.constant 0 : i32
    %1 = arith.cmpi eq, %c16_i32, %c0_i32 : i32
    %c1_i32 = arith.constant 1 : i32
    %2 = arith.select %1, %c1_i32, %c16_i32 : i32
    %3 = vector.broadcast %2 : i32 to vector<16x1xi32>
    %4 = arith.remsi %0, %3 : vector<16x1xi32>
    %c0_i32_0 = arith.constant 0 : i32
    %5 = vector.broadcast %c0_i32_0 : i32 to vector<16x1xi32>
    %6 = arith.cmpi ne, %4, %5 : vector<16x1xi32>
    %c0_i32_1 = arith.constant 0 : i32
    %7 = vector.broadcast %c0_i32_1 : i32 to vector<16x1xi32>
    %8 = arith.cmpi slt, %4, %7 : vector<16x1xi32>
    %c0_i32_2 = arith.constant 0 : i32
    %9 = arith.cmpi slt, %2, %c0_i32_2 : i32
    %10 = vector.broadcast %9 : i1 to vector<16x1xi1>
    %11 = vector.broadcast %10 : vector<16x1xi1> to vector<16x1xi1>
    %12 = arith.xori %8, %11 : vector<16x1xi1>
    %13 = arith.andi %12, %6 : vector<16x1xi1>
    %14 = vector.broadcast %2 : i32 to vector<16x1xi32>
    %15 = arith.addi %4, %14 : vector<16x1xi32>
    %16 = arith.select %13, %15, %4 : vector<16x1xi1>, vector<16x1xi32>
    %c0_i32_3 = arith.constant 0 : i32
    %17 = vector.broadcast %c0_i32_3 : i32 to vector<16x1xi32>
    %18 = arith.cmpi ne, %16, %17 : vector<16x1xi32>
    %c15_i32 = arith.constant 15 : i32
    %19 = vector.broadcast %c15_i32 : i32 to vector<16x1xi32>
    %20 = arith.cmpi ne, %16, %19 : vector<16x1xi32>
    %c0 = arith.constant 0 : index
    %c0_4 = arith.constant 0 : index
    %c0_5 = arith.constant 0 : index
    %21 = vector.load %arg1[%c0, %c0_4, %c0_5] : memref<3x64x128xf32, #tpu.memory_space<vmem>>, vector<1x64x128xf32>
    %22 = vector.shape_cast %21 : vector<1x64x128xf32> to vector<64x128xf32>
    %c1 = arith.constant 1 : index
    %c0_6 = arith.constant 0 : index
    %c0_7 = arith.constant 0 : index
    %23 = vector.load %arg1[%c1, %c0_6, %c0_7] : memref<3x64x128xf32, #tpu.memory_space<vmem>>, vector<1x64x128xf32>
    %24 = vector.shape_cast %23 : vector<1x64x128xf32> to vector<64x128xf32>
    %c2 = arith.constant 2 : index
    %c0_8 = arith.constant 0 : index
    %c0_9 = arith.constant 0 : index
    %25 = vector.load %arg1[%c2, %c0_8, %c0_9] : memref<3x64x128xf32, #tpu.memory_space<vmem>>, vector<1x64x128xf32>
    %26 = vector.shape_cast %25 : vector<1x64x128xf32> to vector<64x128xf32>
    %c0_10 = arith.constant 0 : index
    %c0_11 = arith.constant 0 : index
    %c0_12 = arith.constant 0 : index
    %27 = vector.load %arg2[%c0_10, %c0_11, %c0_12] : memref<3x128x64xf32, #tpu.memory_space<vmem>>, vector<1x128x64xf32>
    %28 = vector.shape_cast %27 : vector<1x128x64xf32> to vector<128x64xf32>
    %c1_13 = arith.constant 1 : index
    %c0_14 = arith.constant 0 : index
    %c0_15 = arith.constant 0 : index
    %29 = vector.load %arg2[%c1_13, %c0_14, %c0_15] : memref<3x128x64xf32, #tpu.memory_space<vmem>>, vector<1x128x64xf32>
    %30 = vector.shape_cast %29 : vector<1x128x64xf32> to vector<128x64xf32>
    %c2_16 = arith.constant 2 : index
    %c0_17 = arith.constant 0 : index
    %c0_18 = arith.constant 0 : index
    %31 = vector.load %arg2[%c2_16, %c0_17, %c0_18] : memref<3x128x64xf32, #tpu.memory_space<vmem>>, vector<1x128x64xf32>
    %32 = vector.shape_cast %31 : vector<1x128x64xf32> to vector<128x64xf32>
    %c0_19 = arith.constant 0 : index
    %c0_20 = arith.constant 0 : index
    %33 = vector.load %arg0[%c0_19, %c0_20] : memref<16x64xf32, #tpu.memory_space<vmem>>, vector<16x64xf32>
    %cst = arith.constant 1.000000e+00 : f32
    %34 = vector.broadcast %cst : f32 to vector<1x1xf32>
    %cst_21 = arith.constant 0x7F800000 : f32
    %35 = vector.broadcast %cst_21 : f32 to vector<1x1xf32>
    %c0_i32_22 = arith.constant 0 : i32
    %c300_i32 = arith.constant 300 : i32
    %36 = arith.addi %c0_i32_22, %c300_i32 : i32
    %c1_i32_23 = arith.constant 1 : i32
    %37:3 = scf.for %arg4 = %c0_i32_22 to %36 step %c1_i32_23 iter_args(%arg5 = %33, %arg6 = %34, %arg7 = %35) -> (vector<16x64xf32>, vector<1x1xf32>, vector<1x1xf32>)  : i32 {
      %cst_26 = arith.constant 9.99999974E-5 : f32
      %39 = vector.broadcast %cst_26 : f32 to vector<1x1xf32>
      %40 = arith.cmpf oge, %arg7, %39 : vector<1x1xf32>
      %cst_27 = arith.constant dense<0.000000e+00> : vector<16x128xf32>
      %41 = tpu.matmul %arg5, %24, %cst_27 {dimension_numbers = #tpu.dot_dimension_numbers<[1], [0], [0], [1], [0, 0, 1, 1], [], []>} : vector<16x64xf32>, vector<64x128xf32>, vector<16x128xf32> -> vector<16x128xf32>
      %c1_i32_28 = arith.constant 1 : i32
      %42 = tpu.dynamic_rotate %arg5 by %c1_i32_28 dim 0 : vector<16x64xf32>, i32 -> vector<16x64xf32>
      %cst_29 = arith.constant 0.000000e+00 : f32
      %43 = vector.shape_cast %18 : vector<16x1xi1> to vector<16x1xi1>
      %44 = vector.broadcast %43 : vector<16x1xi1> to vector<16x64xi1>
      %45 = vector.broadcast %cst_29 : f32 to vector<16x64xf32>
      %46 = arith.select %44, %42, %45 : vector<16x64xi1>, vector<16x64xf32>
      %cst_30 = arith.constant dense<0.000000e+00> : vector<16x128xf32>
      %47 = tpu.matmul %46, %22, %cst_30 {dimension_numbers = #tpu.dot_dimension_numbers<[1], [0], [0], [1], [0, 0, 1, 1], [], []>} : vector<16x64xf32>, vector<64x128xf32>, vector<16x128xf32> -> vector<16x128xf32>
      %48 = arith.addf %41, %47 : vector<16x128xf32>
      %c15_i32_31 = arith.constant 15 : i32
      %49 = tpu.dynamic_rotate %arg5 by %c15_i32_31 dim 0 : vector<16x64xf32>, i32 -> vector<16x64xf32>
      %cst_32 = arith.constant 0.000000e+00 : f32
      %50 = vector.shape_cast %20 : vector<16x1xi1> to vector<16x1xi1>
      %51 = vector.broadcast %50 : vector<16x1xi1> to vector<16x64xi1>
      %52 = vector.broadcast %cst_32 : f32 to vector<16x64xf32>
      %53 = arith.select %51, %49, %52 : vector<16x64xi1>, vector<16x64xf32>
      %cst_33 = arith.constant dense<0.000000e+00> : vector<16x128xf32>
      %54 = tpu.matmul %53, %26, %cst_33 {dimension_numbers = #tpu.dot_dimension_numbers<[1], [0], [0], [1], [0, 0, 1, 1], [], []>} : vector<16x64xf32>, vector<64x128xf32>, vector<16x128xf32> -> vector<16x128xf32>
      %55 = arith.addf %48, %54 : vector<16x128xf32>
      %cst_34 = arith.constant dense<0.000000e+00> : vector<16x64xf32>
      %56 = tpu.matmul %55, %30, %cst_34 {dimension_numbers = #tpu.dot_dimension_numbers<[1], [0], [0], [1], [0, 0, 1, 1], [], []>} : vector<16x128xf32>, vector<128x64xf32>, vector<16x64xf32> -> vector<16x64xf32>
      %c1_i32_35 = arith.constant 1 : i32
      %57 = tpu.dynamic_rotate %55 by %c1_i32_35 dim 0 : vector<16x128xf32>, i32 -> vector<16x128xf32>
      %cst_36 = arith.constant 0.000000e+00 : f32
      %58 = vector.shape_cast %18 : vector<16x1xi1> to vector<16x1xi1>
      %59 = vector.broadcast %58 : vector<16x1xi1> to vector<16x128xi1>
      %60 = vector.broadcast %cst_36 : f32 to vector<16x128xf32>
      %61 = arith.select %59, %57, %60 : vector<16x128xi1>, vector<16x128xf32>
      %cst_37 = arith.constant dense<0.000000e+00> : vector<16x64xf32>
      %62 = tpu.matmul %61, %28, %cst_37 {dimension_numbers = #tpu.dot_dimension_numbers<[1], [0], [0], [1], [0, 0, 1, 1], [], []>} : vector<16x128xf32>, vector<128x64xf32>, vector<16x64xf32> -> vector<16x64xf32>
      %63 = arith.addf %56, %62 : vector<16x64xf32>
      %c15_i32_38 = arith.constant 15 : i32
      %64 = tpu.dynamic_rotate %55 by %c15_i32_38 dim 0 : vector<16x128xf32>, i32 -> vector<16x128xf32>
      %cst_39 = arith.constant 0.000000e+00 : f32
      %65 = vector.shape_cast %20 : vector<16x1xi1> to vector<16x1xi1>
      %66 = vector.broadcast %65 : vector<16x1xi1> to vector<16x128xi1>
      %67 = vector.broadcast %cst_39 : f32 to vector<16x128xf32>
      %68 = arith.select %66, %64, %67 : vector<16x128xi1>, vector<16x128xf32>
      %cst_40 = arith.constant dense<0.000000e+00> : vector<16x64xf32>
      %69 = tpu.matmul %68, %32, %cst_40 {dimension_numbers = #tpu.dot_dimension_numbers<[1], [0], [0], [1], [0, 0, 1, 1], [], []>} : vector<16x128xf32>, vector<128x64xf32>, vector<16x64xf32> -> vector<16x64xf32>
      %70 = arith.addf %63, %69 : vector<16x64xf32>
      %71 = arith.mulf %70, %70 : vector<16x64xf32>
      %cst_41 = arith.constant dense<0.000000e+00> : vector<16xf32>
      %72 = vector.multi_reduction <add>, %71, %cst_41 [1] : vector<16x64xf32> to vector<16xf32>
      %73 = vector.shape_cast %72 : vector<16xf32> to vector<16x1xf32>
      %cst_42 = arith.constant dense<0.000000e+00> : vector<1xf32>
      %74 = vector.multi_reduction <add>, %73, %cst_42 [0] : vector<16x1xf32> to vector<1xf32>
      %75 = vector.shape_cast %74 : vector<1xf32> to vector<1x1xf32>
      %cst_43 = arith.constant 1.000000e-30 : f32
      %76 = vector.broadcast %cst_43 : f32 to vector<1x1xf32>
      %77 = arith.addf %75, %76 : vector<1x1xf32>
      %78 = math.rsqrt %77 : vector<1x1xf32>
      %79 = arith.mulf %75, %78 : vector<1x1xf32>
      %80 = arith.subf %79, %arg6 : vector<1x1xf32>
      %81 = math.absf %80 : vector<1x1xf32>
      %82 = arith.divf %81, %arg6 : vector<1x1xf32>
      %83 = vector.broadcast %78 : vector<1x1xf32> to vector<16x64xf32>
      %84 = arith.mulf %70, %83 : vector<16x64xf32>
      %85 = vector.shape_cast %40 : vector<1x1xi1> to vector<1x1xi1>
      %86 = vector.broadcast %85 : vector<1x1xi1> to vector<16x64xi1>
      %87 = arith.select %86, %84, %arg5 : vector<16x64xi1>, vector<16x64xf32>
      %88 = arith.select %40, %79, %arg6 : vector<1x1xi1>, vector<1x1xf32>
      %89 = arith.select %40, %82, %arg7 : vector<1x1xi1>, vector<1x1xf32>
      scf.yield %87, %88, %89 : vector<16x64xf32>, vector<1x1xf32>, vector<1x1xf32>
    }
    %c0_24 = arith.constant 0 : index
    %c0_25 = arith.constant 0 : index
    %38 = vector.load %arg3[%c0_24, %c0_25] : memref<1x1xf32, #tpu.memory_space<vmem>>, vector<1x1xf32>
    tpu.vector_store %arg3[%c0_24, %c0_25], %37#1 {strides = array<i32>} : memref<1x1xf32, #tpu.memory_space<vmem>>, vector<1x1xf32>,
    return
  }
}

</mosaic_0001>

<llo_original>
// kernel: tpu_custom_call.1
$region0: #{tpu_custom_call.1}
  #allocation0 [shape = 'u32[]', space=smem, size = 0x4, offset = 0x4, fixed_abs, tag = 'smem constant byte address 0x4 - core index']
  #allocation1 [shape = 'u32[72,128]{1,0:T(1,128)}', space=vmem, size = 0x9000, scoped, tag = 'internal scratch']
  %s0 = inlined_call_operand.vmem [shape: f32[16,64], index: 0, kind: input, shape index: {}]
  %s1 = inlined_call_operand.vmem [shape: f32[3,64,128], index: 1, kind: input, shape index: {}]
  %s2 = inlined_call_operand.vmem [shape: f32[3,128,64], index: 2, kind: input, shape index: {}]
  %s3 = inlined_call_operand.hbm [shape: f32[1,1], index: 3, kind: output, shape index: {}]
  %s4 = sld [smem:[#allocation0]]
  $region29: #{tpu_custom_call.1} parent=0
    _
  %s6 = ssub.s32 1, %s4
  %s7 = scalar_select 0, %s6, %s4
  $region1: #{tpu_custom_call.1} parent=0
    #allocation2 [shape = 'u8[512]{0}', space=vmem, size = 0x400, scoped, tag = 'output window, operand 0, single buffered']
    #allocation3 [shape = 's32[1]{0}', space=sflag, size = 0x4, scoped, tag = 'scoped memory for tpu_custom_call.1']
    %8 = vsyncpa [#allocation3], 0
    // Predicated region
    $region2: #{tpu_custom_call.1} parent=1 // pred_check
      _
    $region3: #{tpu_custom_call.1} parent=1 // pred_check_branch
      %10 = sbr.rel (0) target = $region5
    $region4: #{tpu_custom_call.1} parent=1 // pred_region
      _
    $region5: #{tpu_custom_call.1} parent=1 // pred_fallthru
      _
    // Predicated region
    $region6: #{tpu_custom_call.1} parent=1 // pred_check
      _
    $region7: #{tpu_custom_call.1} parent=1 // pred_check_branch
      %12 = sbr.rel (0) target = $region9
    $region8: #{tpu_custom_call.1} parent=1 // pred_region
      _
    $region9: #{tpu_custom_call.1} parent=1 // pred_fallthru
      _
    // Predicated region
    $region10: #{tpu_custom_call.1} parent=1 // pred_check
      _
    $region11: #{tpu_custom_call.1} parent=1 // pred_check_branch
      %14 = sbr.rel (0) target = $region13
    $region12: #{tpu_custom_call.1} parent=1 // pred_region
      _
    $region13: #{tpu_custom_call.1} parent=1 // pred_fallthru
      _
    %v15 = vlaneseq
    %v16 = vshrl.u32 %v15, 7
    %v17 = vadd.s32 %v16, 8
    %vm18 = vcmp.lt.s32.totalorder %v16, 0
    %v19 = vsub.s32 0, %v16
    %v20 = vsel %vm18, %v19, %v16
    %v21 = vshrl.u32 %v20, 4
    %v22 = vand.u32 %v20, 15
    %v23 = vsub.s32 0, %v22
    %v24 = vsel %vm18, %v23, %v22
    %vm25 = vcmp.lt.s32.totalorder %v17, 0
    %v26 = vsub.s32 0, %v17
    %v27 = vsel %vm25, %v26, %v17
    %v28 = vshrl.u32 %v27, 4
    %v29 = vand.u32 %v27, 15
    %v30 = vsub.s32 0, %v29
    %v31 = vsel %vm25, %v30, %v29
    %vm32 = vcmp.ne.s32.totalorder %v24, 0
    %vm33 = vcmp.ne.s32.totalorder %v31, 0
    %vm34 = vcmp.lt.s32.totalorder %v24, 0
    %vm35 = vcmp.lt.s32.totalorder %v31, 0
    %vm36 = vmand %vm34, %vm32
    %vm37 = vmand %vm35, %vm33
    %v38 = vadd.s32 %v24, 16
    %v39 = vadd.s32 %v31, 16
    %v40 = vsel %vm36, %v38, %v24
    %v41 = vsel %vm37, %v39, %v31
    %vm42 = vcmp.ne.s32.totalorder %v40, 0
    %vm43 = vcmp.ne.s32.totalorder %v41, 0
    %vm44 = vcmp.ne.s32.totalorder %v40, 15
    %vm45 = vcmp.ne.s32.totalorder %v41, 15
    %v46 = vld [vmem:[%s1] sm:$0xff]
    %v47 = vld [vmem:[%s1 + $0x8] sm:$0xff]
    %v48 = vld [vmem:[%s1 + $0x10] sm:$0xff]
    %v49 = vld [vmem:[%s1 + $0x18] sm:$0xff]
    %v50 = vld [vmem:[%s1 + $0x20] sm:$0xff]
    %v51 = vld [vmem:[%s1 + $0x28] sm:$0xff]
    %v52 = vld [vmem:[%s1 + $0x30] sm:$0xff]
    %v53 = vld [vmem:[%s1 + $0x38] sm:$0xff]
    %s54 = scalar_lea.vmem %s1, 64
    %v55 = vld [vmem:[%s54] sm:$0xff]
    %v56 = vld [vmem:[%s54 + $0x8] sm:$0xff]
    %v57 = vld [vmem:[%s54 + $0x10] sm:$0xff]
    %v58 = vld [vmem:[%s54 + $0x18] sm:$0xff]
    %v59 = vld [vmem:[%s54 + $0x20] sm:$0xff]
    %v60 = vld [vmem:[%s54 + $0x28] sm:$0xff]
    %v61 = vld [vmem:[%s54 + $0x30] sm:$0xff]
    %v62 = vld [vmem:[%s54 + $0x38] sm:$0xff]
    %s63 = scalar_lea.vmem %s1, 128
    %v64 = vld [vmem:[%s63] sm:$0xff]
    %v65 = vld [vmem:[%s63 + $0x8] sm:$0xff]
    %v66 = vld [vmem:[%s63 + $0x10] sm:$0xff]
    %v67 = vld [vmem:[%s63 + $0x18] sm:$0xff]
    %v68 = vld [vmem:[%s63 + $0x20] sm:$0xff]
    %v69 = vld [vmem:[%s63 + $0x28] sm:$0xff]
    %v70 = vld [vmem:[%s63 + $0x30] sm:$0xff]
    %v71 = vld [vmem:[%s63 + $0x38] sm:$0xff]
    %v72 = vld [vmem:[%s2] sm:$0xff]
    %v73 = vld [vmem:[%s2 + $0x8] sm:$0xff]
    %v74 = vld [vmem:[%s2 + $0x10] sm:$0xff]
    %v75 = vld [vmem:[%s2 + $0x18] sm:$0xff]
    %v76 = vld [vmem:[%s2 + $0x20] sm:$0xff]
    %v77 = vld [vmem:[%s2 + $0x28] sm:$0xff]
    %v78 = vld [vmem:[%s2 + $0x30] sm:$0xff]
    %v79 = vld [vmem:[%s2 + $0x38] sm:$0xff]
    %v80 = vld [vmem:[%s2 + $0x40] sm:$0xff]
    %v81 = vld [vmem:[%s2 + $0x48] sm:$0xff]
    %v82 = vld [vmem:[%s2 + $0x50] sm:$0xff]
    %v83 = vld [vmem:[%s2 + $0x58] sm:$0xff]
    %v84 = vld [vmem:[%s2 + $0x60] sm:$0xff]
    %v85 = vld [vmem:[%s2 + $0x68] sm:$0xff]
    %v86 = vld [vmem:[%s2 + $0x70] sm:$0xff]
    %v87 = vld [vmem:[%s2 + $0x78] sm:$0xff]
    %s88 = scalar_lea.vmem %s2, 128
    %v89 = vld [vmem:[%s88] sm:$0xff]
    %v90 = vld [vmem:[%s88 + $0x8] sm:$0xff]
    %v91 = vld [vmem:[%s88 + $0x10] sm:$0xff]
    %v92 = vld [vmem:[%s88 + $0x18] sm:$0xff]
    %v93 = vld [vmem:[%s88 + $0x20] sm:$0xff]
    %v94 = vld [vmem:[%s88 + $0x28] sm:$0xff]
    %v95 = vld [vmem:[%s88 + $0x30] sm:$0xff]
    %v96 = vld [vmem:[%s88 + $0x38] sm:$0xff]
    %v97 = vld [vmem:[%s88 + $0x40] sm:$0xff]
    %v98 = vld [vmem:[%s88 + $0x48] sm:$0xff]
    %v99 = vld [vmem:[%s88 + $0x50] sm:$0xff]
    %v100 = vld [vmem:[%s88 + $0x58] sm:$0xff]
    %v101 = vld [vmem:[%s88 + $0x60] sm:$0xff]
    %v102 = vld [vmem:[%s88 + $0x68] sm:$0xff]
    %v103 = vld [vmem:[%s88 + $0x70] sm:$0xff]
    %v104 = vld [vmem:[%s88 + $0x78] sm:$0xff]
    %s105 = scalar_lea.vmem %s2, 256
    %v106 = vld [vmem:[%s105] sm:$0xff]
    %v107 = vld [vmem:[%s105 + $0x8] sm:$0xff]
    %v108 = vld [vmem:[%s105 + $0x10] sm:$0xff]
    %v109 = vld [vmem:[%s105 + $0x18] sm:$0xff]
    %v110 = vld [vmem:[%s105 + $0x20] sm:$0xff]
    %v111 = vld [vmem:[%s105 + $0x28] sm:$0xff]
    %v112 = vld [vmem:[%s105 + $0x30] sm:$0xff]
    %v113 = vld [vmem:[%s105 + $0x38] sm:$0xff]
    %v114 = vld [vmem:[%s105 + $0x40] sm:$0xff]
    %v115 = vld [vmem:[%s105 + $0x48] sm:$0xff]
    %v116 = vld [vmem:[%s105 + $0x50] sm:$0xff]
    %v117 = vld [vmem:[%s105 + $0x58] sm:$0xff]
    %v118 = vld [vmem:[%s105 + $0x60] sm:$0xff]
    %v119 = vld [vmem:[%s105 + $0x68] sm:$0xff]
    %v120 = vld [vmem:[%s105 + $0x70] sm:$0xff]
    %v121 = vld [vmem:[%s105 + $0x78] sm:$0xff]
    %v122 = vld [vmem:[%s0] sm:$0xff]
    %v123 = vld [vmem:[%s0 + $0x8] sm:$0xff]
    loop: start=0, step=1, limit=300
    $region14: #{tpu_custom_call.1} parent=1 // loop_pre_header
      _
    $region15: #{tpu_custom_call.1} parent=1 // loop_header
      %s125 = sphi 0, %s129
      %p126 = scmp.ge.s32.totalorder %s125, 300
      %v130 = vphi %v122, %v378
      %v131 = vphi %v123, %v379
      %v132 = vphi 1.0, %v380
      %v133 = vphi inf, %v381
    $region16: #{tpu_custom_call.1} parent=1 // loop_header_branch
      %128 = sbr.rel (%p126) target = $region20
    $region17: #{tpu_custom_call.1} parent=1 // loop_body
      %vm134 = vcmp.ge.f32.partialorder %v133, 0.0001
      %v135 = vrot.slane %v130, 7
      %v136 = vrot.slane %v131, 7
      %vm137 = vcmp.lt.s32.totalorder %v16, 1
      %v138 = vsel %vm137, %v135, %v136
      %v139 = vsel %vm137, %v136, %v135
      %v140 = vsel %vm42, 1, 0
      %v141 = vsel %vm43, 1, 0
      %vm142 = vcmp.eq.s32.totalorder %v140, 1
      %vm143 = vcmp.eq.s32.totalorder %v141, 1
      %v144 = vsel %vm142, %v139, 0.0
      %v145 = vsel %vm143, %v138, 0.0
      %vm146 = vcmask 523264
      %v148 = vsel %vm146, %v144, 0
      %v151 = vsel %vm146, %v145, 0
      %153 = vmatpush.msra.mxu0 0.0
      %154 = vmatpush.msra.mxu0 0.0
      %155 = vmatpush.msra.mxu0 0.0
      %156 = vmatpush.msra.mxu0 0.0
      %157 = vmatpush.msra.mxu0 0.0
      %158 = vmatpush.msra.mxu0 0.0
      %159 = vmatpush.msra.mxu0 0.0
      %160 = vmatpush.msra.mxu0 0.0
      %161 = vmatpush.msra.mxu0 %v53
      %162 = vmatpush.msra.mxu0 %v52
      %163 = vmatpush.msra.mxu0 %v51
      %164 = vmatpush.msra.mxu0 %v50
      %165 = vmatpush.msra.mxu0 %v49
      %166 = vmatpush.msra.mxu0 %v48
      %167 = vmatpush.msra.mxu0 %v47
      %168 = vmatpush.msra.mxu0 %v46
      %169 = vmatmul.f32.gmra.mxu0 %v148
      %v170 = vpop.f32.mrf.mxu0
      %v171 = vadd.f32 0.0, %v170
      %172 = vmatmul.f32.gmra.mxu0 %v151
      %v173 = vpop.f32.mrf.mxu0
      %v174 = vadd.f32 0.0, %v173
      %175 = vdwg.mxu0
      %v177 = vsel %vm146, %v130, 0
      %v180 = vsel %vm146, %v131, 0
      %182 = vmatpush.msra.mxu0 0.0
      %183 = vmatpush.msra.mxu0 0.0
      %184 = vmatpush.msra.mxu0 0.0
      %185 = vmatpush.msra.mxu0 0.0
      %186 = vmatpush.msra.mxu0 0.0
      %187 = vmatpush.msra.mxu0 0.0
      %188 = vmatpush.msra.mxu0 0.0
      %189 = vmatpush.msra.mxu0 0.0
      %190 = vmatpush.msra.mxu0 %v62
      %191 = vmatpush.msra.mxu0 %v61
      %192 = vmatpush.msra.mxu0 %v60
      %193 = vmatpush.msra.mxu0 %v59
      %194 = vmatpush.msra.mxu0 %v58
      %195 = vmatpush.msra.mxu0 %v57
      %196 = vmatpush.msra.mxu0 %v56
      %197 = vmatpush.msra.mxu0 %v55
      %198 = vmatmul.f32.gmra.mxu0 %v177
      %v199 = vpop.f32.mrf.mxu0
      %v200 = vadd.f32 %v171, %v199
      %201 = vmatmul.f32.gmra.mxu0 %v180
      %v202 = vpop.f32.mrf.mxu0
      %v203 = vadd.f32 %v174, %v202
      %204 = vdwg.mxu0
      %v205 = vrot.slane %v130, 1
      %v206 = vrot.slane %v131, 1
      %vm207 = vcmp.lt.s32.totalorder %v16, 7
      %v208 = vsel %vm207, %v205, %v206
      %v209 = vsel %vm207, %v206, %v205
      %v210 = vsel %vm44, 1, 0
      %v211 = vsel %vm45, 1, 0
      %vm212 = vcmp.eq.s32.totalorder %v210, 1
      %vm213 = vcmp.eq.s32.totalorder %v211, 1
      %v214 = vsel %vm212, %v208, 0.0
      %v215 = vsel %vm213, %v209, 0.0
      %v217 = vsel %vm146, %v214, 0
      %v220 = vsel %vm146, %v215, 0
      %222 = vmatpush.msra.mxu0 0.0
      %223 = vmatpush.msra.mxu0 0.0
      %224 = vmatpush.msra.mxu0 0.0
      %225 = vmatpush.msra.mxu0 0.0
      %226 = vmatpush.msra.mxu0 0.0
      %227 = vmatpush.msra.mxu0 0.0
      %228 = vmatpush.msra.mxu0 0.0
      %229 = vmatpush.msra.mxu0 0.0
      %230 = vmatpush.msra.mxu0 %v71
      %231 = vmatpush.msra.mxu0 %v70
      %232 = vmatpush.msra.mxu0 %v69
      %233 = vmatpush.msra.mxu0 %v68
      %234 = vmatpush.msra.mxu0 %v67
      %235 = vmatpush.msra.mxu0 %v66
      %236 = vmatpush.msra.mxu0 %v65
      %237 = vmatpush.msra.mxu0 %v64
      %238 = vmatmul.f32.gmra.mxu0 %v217
      %v239 = vpop.f32.mrf.mxu0
      %v240 = vadd.f32 0.0, %v239
      %241 = vmatmul.f32.gmra.mxu0 %v220
      %v242 = vpop.f32.mrf.mxu0
      %v243 = vadd.f32 0.0, %v242
      %244 = vdwg.mxu0
      %v245 = vadd.f32 %v200, %v240
      %v246 = vadd.f32 %v203, %v243
      %v247 = vrot.slane %v245, 7
      %v248 = vrot.slane %v246, 7
      %v249 = vsel %vm137, %v247, %v248
      %v250 = vsel %vm137, %v248, %v247
      %v251 = vsel %vm142, %v250, 0.0
      %v252 = vsel %vm143, %v249, 0.0
      %253 = vmatpush.msra.mxu0 %v87
      %254 = vmatpush.msra.mxu0 %v86
      %255 = vmatpush.msra.mxu0 %v85
      %256 = vmatpush.msra.mxu0 %v84
      %257 = vmatpush.msra.mxu0 %v83
      %258 = vmatpush.msra.mxu0 %v82
      %259 = vmatpush.msra.mxu0 %v81
      %260 = vmatpush.msra.mxu0 %v80
      %261 = vmatpush.msra.mxu0 %v79
      %262 = vmatpush.msra.mxu0 %v78
      %263 = vmatpush.msra.mxu0 %v77
      %264 = vmatpush.msra.mxu0 %v76
      %265 = vmatpush.msra.mxu0 %v75
      %266 = vmatpush.msra.mxu0 %v74
      %267 = vmatpush.msra.mxu0 %v73
      %268 = vmatpush.msra.mxu0 %v72
      %269 = vmatmul.f32.gmra.mxu0 %v251
      %v270 = vpop.f32.mrf.mxu0
      %v271 = vadd.f32 0.0, %v270
      %272 = vmatmul.f32.gmra.mxu0 %v252
      %v273 = vpop.f32.mrf.mxu0
      %v274 = vadd.f32 0.0, %v273
      %275 = vdwg.mxu0
      %276 = vmatpush.msra.mxu0 %v104
      %277 = vmatpush.msra.mxu0 %v103
      %278 = vmatpush.msra.mxu0 %v102
      %279 = vmatpush.msra.mxu0 %v101
      %280 = vmatpush.msra.mxu0 %v100
      %281 = vmatpush.msra.mxu0 %v99
      %282 = vmatpush.msra.mxu0 %v98
      %283 = vmatpush.msra.mxu0 %v97
      %284 = vmatpush.msra.mxu0 %v96
      %285 = vmatpush.msra.mxu0 %v95
      %286 = vmatpush.msra.mxu0 %v94
      %287 = vmatpush.msra.mxu0 %v93
      %288 = vmatpush.msra.mxu0 %v92
      %289 = vmatpush.msra.mxu0 %v91
      %290 = vmatpush.msra.mxu0 %v90
      %291 = vmatpush.msra.mxu0 %v89
      %292 = vmatmul.f32.gmra.mxu0 %v245
      %v293 = vpop.f32.mrf.mxu0
      %v294 = vadd.f32 %v271, %v293
      %295 = vmatmul.f32.gmra.mxu0 %v246
      %v296 = vpop.f32.mrf.mxu0
      %v297 = vadd.f32 %v274, %v296
      %298 = vdwg.mxu0
      %v299 = vrot.slane %v245, 1
      %v300 = vrot.slane %v246, 1
      %v301 = vsel %vm207, %v299, %v300
      %v302 = vsel %vm207, %v300, %v299
      %v303 = vsel %vm212, %v301, 0.0
      %v304 = vsel %vm213, %v302, 0.0
      %305 = vmatpush.msra.mxu0 %v121
      %306 = vmatpush.msra.mxu0 %v120
      %307 = vmatpush.msra.mxu0 %v119
      %308 = vmatpush.msra.mxu0 %v118
      %309 = vmatpush.msra.mxu0 %v117
      %310 = vmatpush.msra.mxu0 %v116
      %311 = vmatpush.msra.mxu0 %v115
      %312 = vmatpush.msra.mxu0 %v114
      %313 = vmatpush.msra.mxu0 %v113
      %314 = vmatpush.msra.mxu0 %v112
      %315 = vmatpush.msra.mxu0 %v111
      %316 = vmatpush.msra.mxu0 %v110
      %317 = vmatpush.msra.mxu0 %v109
      %318 = vmatpush.msra.mxu0 %v108
      %319 = vmatpush.msra.mxu0 %v107
      %320 = vmatpush.msra.mxu0 %v106
      %321 = vmatmul.f32.gmra.mxu0 %v303
      %v322 = vpop.f32.mrf.mxu0
      %v323 = vadd.f32 0.0, %v322
      %324 = vmatmul.f32.gmra.mxu0 %v304
      %v325 = vpop.f32.mrf.mxu0
      %v326 = vadd.f32 0.0, %v325
      %327 = vdwg.mxu0
      %v328 = vadd.f32 %v294, %v323
      %v329 = vadd.f32 %v297, %v326
      %v330 = vmul.f32 %v328, %v328
      %v331 = vmul.f32 %v329, %v329
      %v332 = vsel %vm146, %v330, 0.0
      %333 = vadd.xlane.f32.xlu0 %v332
      %v334 = vpop.xlane.xlu0 %333
      %v335 = vsel %vm146, %v331, 0.0
      %336 = vadd.xlane.f32.xlu0 %v335
      %v337 = vpop.xlane.xlu0 %336
      %v338 = vadd.f32 %v334, %v337
      %v339 = vrot.slane %v338, 4
      %v340 = vadd.f32 %v338, %v339
      %v341 = vrot.slane %v340, 2
      %v342 = vadd.f32 %v340, %v341
      %v343 = vrot.slane %v342, 1
      %v344 = vadd.f32 %v342, %v343
      %v345 = vadd.f32 %v344, 1e-30
      %v346 = vrsqrt.pop %v345
      %v347 = vmul.f32 %v346, %v345
      %v348 = vmul.f32 %v347, %v346
      %v349 = vmul.f32 0.5, %v348
      %v350 = vsub.f32 1.5, %v349
      %v351 = vmul.f32 %v346, %v350
      %vm352 = vweird.f32 %v345
      %vm353 = vweird.f32 %v346
      %vm354 = vmor %vm352, %vm353
      %v355 = vsel %vm354, %v346, %v351
      %v356 = vmul.f32 %v344, %v355
      %v357 = vsub.f32 %v356, %v132
      %v358 = vand.u32 2147483647, %v357
      %v359 = vrcp.pop %v132
      %v360 = vmul.f32 %v132, %v359
      %v361 = vsub.f32 1.0, %v360
      %v362 = vmul.f32 %v359, %v361
      %v363 = vadd.f32 %v359, %v362
      %vm364 = vweird.f32 %v132
      %vm365 = vweird.f32 %v359
      %vm366 = vmor %vm364, %vm365
      %v367 = vsel %vm366, %v359, %v363
      %v368 = vand.u32 2147483647, %v132
      %vm369 = vcmp.eq.f32.partialorder %v368, 8.507059e+37
      %v370 = vand.u32 %v132, 2147483648
      %v371 = vor.u32 1.1754944e-38, %v370
      %v372 = vsel %vm369, %v371, %v367
      %v373 = vmul.f32 %v358, %v372
      %v374 = vmul.f32 %v328, %v355
      %v375 = vmul.f32 %v329, %v355
      %v376 = vsel %vm134, 1, 0
      %vm377 = vcmp.eq.s32.totalorder %v376, 1
      %v378 = vsel %vm377, %v374, %v130
      %v379 = vsel %vm377, %v375, %v131
      %v380 = vsel %vm134, %v356, %v132
      %v381 = vsel %vm134, %v373, %v133
    $region18: #{tpu_custom_call.1} parent=1 // loop_footer
      %s129 = sadd.s32 1, %s125
    $region19: #{tpu_custom_call.1} parent=1 // loop_footer_branch
      %124 = sbr.rel target = $region15
    $region20: #{tpu_custom_call.1} parent=1 // loop_exit
      _
    %vm382 = vcmask 0
    %383 = vst.msk [vmem:[#allocation2] sm:$0x1] %vm382, %v132
    // Predicated region
    $region21: #{tpu_custom_call.1} parent=1 // pred_check
      _
    $region22: #{tpu_custom_call.1} parent=1 // pred_check_branch
      %385 = sbr.rel (0) target = $region24
    $region23: #{tpu_custom_call.1} parent=1 // pred_region
      %387 = vsyncadd [#allocation3], 0
      %s389 = sshll.u32 [#allocation2], 4
      %s390 = int_to_ptr.vmem [resolvable:$true] %s389
      %s391 = sshll.u32 %s3, 4
      %s392 = int_to_ptr.hbm [resolvable:$true] %s391
      %394 = dma.vmem_to_hbm [thread:$0]  %s390, 16, %s392, [#allocation3]
    $region24: #{tpu_custom_call.1} parent=1 // pred_fallthru
      _
    // Predicated region
    $region25: #{tpu_custom_call.1} parent=1 // pred_check
      _
    $region26: #{tpu_custom_call.1} parent=1 // pred_check_branch
      %396 = sbr.rel (0) target = $region28
    $region27: #{tpu_custom_call.1} parent=1 // pred_region
      %398 = dma.done [#allocation3], 16
    $region28: #{tpu_custom_call.1} parent=1 // pred_fallthru
      _
    %399 = vsyncpa [#allocation3], 1

</llo_original>
